<compile_context>
chip_gen: v7x
topology: tpu7x:2x2x1
jax: 0.10.0
libtpu: 0.0.40
codegen_flags: <defaults>
</compile_context>

<pallas_src>
import numpy as np
import jax
import jax.numpy as jnp
from jax.experimental import pallas as pl
from jax.experimental.pallas import tpu as pltpu


def _round_up(x, m):
    return ((x + m - 1) // m) * m


# ---------------------------------------------------------------------------
# Parameter construction (exact ports of the torch helpers, numpy float64).
# ---------------------------------------------------------------------------
def norm_cm(L):
    m = np.arange(-(L - 1), L, dtype=np.float64)
    return np.power(-1.0, m) * np.sqrt(2.0 * np.pi)


def dlt_weights_dh(L):
    k = np.arange(0, 2 * L, dtype=np.float64)
    C = 2.0 / L * np.sin(np.pi * (2 * k + 1) / (4.0 * L))
    p = np.arange(0, L, dtype=np.float64)
    wk = np.sum(
        (1.0 / (2 * p + 1))[None, :]
        * np.sin((2 * k[:, None] + 1) * (2 * p[None, :] + 1) * np.pi / (4.0 * L)),
        axis=1,
    )
    return C * wk


def idct_matrix(N):
    kk, nn = np.meshgrid(
        np.arange(N, dtype=np.float64), np.arange(N, dtype=np.float64), indexing="ij"
    )
    DI = np.cos(np.pi * nn * (kk + 0.5) / N)
    DI[:, 0] *= (1.0 / N) ** 0.5
    DI[:, 1:] *= (2.0 / N) ** 0.5
    return DI


def idst_matrix(N):
    kk, nn = np.meshgrid(
        np.arange(N, dtype=np.float64), np.arange(N, dtype=np.float64), indexing="ij"
    )
    DI = np.sin(np.pi * (nn + 1) * (kk + 0.5) / N)
    DI[:, N - 1] *= (1.0 / N) ** 0.5
    DI[:, : N - 1] *= (2.0 / N) ** 0.5
    return DI


def make_params(L, w_dtype=jnp.float32, max_tile=1024):
    """Build the fused FDLT operator and its padded/tiled form.

    w_dtype=jnp.bfloat16 halves HBM bytes for the streaming-bound small-batch
    case (all TPU MXUs take bf16 natively); f32 kept as default for tight
    numerical validation against the unfused reference.
    """
    N = 2 * L
    M = 2 * L - 1
    Wdh = dlt_weights_dh(L)
    Tc = np.diag(Wdh) @ idct_matrix(N)   # weightedDCST('c'):  y = x @ Tc
    Ts = np.diag(Wdh) @ idst_matrix(N)   # weightedDCST('s'):  y = x @ Ts
    Cm = norm_cm(L)

    # cInd/sInd partition of the (2L-1) frequency rows.
    cmask = np.zeros((M,), dtype=bool)
    if (L - 1) % 2 == 1:
        cmask[np.arange(1, M, 2)] = True
    else:
        cmask[np.arange(0, M, 2)] = True

    # TODO(synk): wigner_d_SHT_weights_half_pi(L) source was not provided;
    # deterministic random stand-in with the correct (M*L, M*2L) shape.
    D = np.asarray(
        jax.random.normal(jax.random.PRNGKey(1), (M * L, M * N), dtype=jnp.float32),
        dtype=np.float64,
    ) * 0.1
    Dt = D.T                                        # (M*2L, M*L)

    # Fold Cm scaling + per-m DCT/DST into the Wigner matrix (in f64):
    #   out[b, :] = sum_m  x[b, m, :] @ (Cm[m] * T_m @ Dt[m*N:(m+1)*N, :])
    Wf = np.empty((M * N, M * L), dtype=np.float64)
    for m in range(M):
        T_m = Tc if cmask[m] else Ts
        Wf[m * N:(m + 1) * N, :] = Cm[m] * (T_m @ Dt[m * N:(m + 1) * N, :])

    # Tiling / padding constants for the single fused matmul.
    KK, RR = M * N, M * L
    tk = min(max_tile, _round_up(KK, 128))          # reduction tile (lanes of x)
    tn = min(max_tile, _round_up(RR, 128))          # output tile (lane-dense store)
    KKp = _round_up(KK, tk)
    RRp = _round_up(RR, tn)

    # Pre-pad the fused weight once (zero rows/cols contribute nothing).
    Wp = np.zeros((KKp, RRp), dtype=np.float64)
    Wp[:KK, :RR] = Wf

    return dict(
        L=L, KK=KK, RR=RR, KKp=KKp, RRp=RRp, tk=tk, tn=tn,
        W=jnp.asarray(Wp, w_dtype),                 # fused, padded operator
        # unfused pieces kept only for the pure-jnp validation reference:
        Cm=jnp.asarray(Cm, jnp.float32),
        cmask=jnp.asarray(cmask),
        Tc=jnp.asarray(Tc, jnp.float32),
        Ts=jnp.asarray(Ts, jnp.float32),
        Dt=jnp.asarray(Dt, jnp.float32),
    )


# ---------------------------------------------------------------------------
# Pallas kernel: tiled (B2p, KKp) @ (KKp, RRp) with reduction-axis pipelining.
# ---------------------------------------------------------------------------
def fused_fdlt_kernel(x_ref, w_ref, o_ref, acc_ref):
    k = pl.program_id(1)

    @pl.when(k == 0)
    def _():
        acc_ref[...] = jnp.zeros_like(acc_ref)

    acc_ref[...] += jnp.dot(
        x_ref[...].astype(w_ref.dtype), w_ref[...],
        preferred_element_type=jnp.float32,
    )

    @pl.when(k == pl.num_programs(1) - 1)
    def _():
        o_ref[...] = acc_ref[...].astype(o_ref.dtype)


def _fused_call(x2p, Wp, tk, tn):
    B2p, KKp = x2p.shape
    _, RRp = Wp.shape
    grid = (RRp // tn, KKp // tk)                   # reduction axis last
    return pl.pallas_call(
        fused_fdlt_kernel,
        out_shape=jax.ShapeDtypeStruct((B2p, RRp), jnp.float32),
        grid_spec=pltpu.PrefetchScalarGridSpec(
            num_scalar_prefetch=0,
            grid=grid,
            in_specs=[
                pl.BlockSpec((B2p, tk), lambda j, k: (0, k)),
                pl.BlockSpec((tk, tn), lambda j, k: (k, j)),
            ],
            out_specs=pl.BlockSpec((B2p, tn), lambda j, k: (0, j)),
            scratch_shapes=[pltpu.VMEM((B2p, tn), jnp.float32)],
        ),
        compiler_params=pltpu.CompilerParams(
            # output-tile axis parallel (2 TCs on v7x), reduction arbitrary
            dimension_semantics=("parallel", "arbitrary"),
            vmem_limit_bytes=32 * 1024 * 1024,
        ),
    )(x2p, Wp)


# ---------------------------------------------------------------------------
# Forward pass (FFT front in plain JAX, fused FDLT matmul in Pallas).
# ---------------------------------------------------------------------------
def _fft_front(psi, L):
    # TODO(synk): torch.fft.fft(dim=1, norm='forward') + fftshift + [:,1:,:]
    # has no clean Pallas TPU equivalent; done in plain JAX.
    ph = jnp.fft.fftshift(
        jnp.fft.fft(psi.astype(jnp.complex64), axis=1, norm="forward"), axes=1
    )[:, 1:, :]                                     # (b, 2L-1, 2L) complex64
    b = psi.shape[0]
    M, N = 2 * L - 1, 2 * L
    # view_as_real -> permute(0,3,1,2) -> reshape(2b, 2L-1, 2L):
    # batch order is [b0_real, b0_imag, b1_real, b1_imag, ...]
    return jnp.stack([ph.real, ph.imag], axis=1).reshape(2 * b, M, N).astype(jnp.float32)


def ftsht_forward(psi, params):
    L = params["L"]
    b = psi.shape[0]
    M, N = 2 * L - 1, 2 * L
    B2 = 2 * b
    KK, KKp = params["KK"], params["KKp"]
    RR = params["RR"]

    ph = _fft_front(psi, L)                         # (2b, M, 2L)
    x2 = ph.reshape(B2, KK)                         # row-major (m, n) flatten

    # Pad rows to a sublane multiple and lanes to the reduction-tile multiple.
    # (For real MXU fill, run with batch sizes giving B2 >= 128.)
    B2p = _round_up(B2, 8)
    x2p = jnp.pad(x2, ((0, B2p - B2), (0, KKp - KK)))

    out = _fused_call(x2p, params["W"], params["tk"], params["tn"])  # (B2p, RRp)
    out = out[:B2, :RR]

    # reshape (b, 2, M, L), permute, view_as_complex
    P = out.reshape(b, 2, M, L)
    return P[:, 0] + 1j * P[:, 1]                   # (b, 2L-1, L) complex64


def ftsht_reference(psi, params):
    """Pure-jnp reference using the ORIGINAL unfused math (validates both the
    build-time fold and the Pallas kernel)."""
    L = params["L"]
    b = psi.shape[0]
    M, N = 2 * L - 1, 2 * L
    B2 = 2 * b
    ph = _fft_front(psi, L)
    x = ph * params["Cm"][None, :, None]
    xc = jnp.einsum("bmk,kj->bmj", x, params["Tc"])
    xs = jnp.einsum("bmk,kj->bmj", x, params["Ts"])
    z = jnp.where(params["cmask"][None, :, None], xc, xs)
    out = z.reshape(B2, M * N) @ params["Dt"]
    P = out.reshape(b, 2, M, L)
    return P[:, 0] + 1j * P[:, 1]


if __name__ == "__main__":
    L = 8            # bandlimit -> grid is 2L x 2L = 16 x 16
    b = 2
    params = make_params(L)

    key = jax.random.PRNGKey(0)
    psi = jax.random.normal(key, (b, 2 * L, 2 * L), dtype=jnp.float32)

    Psi = jax.block_until_ready(ftsht_forward(psi, params))
    assert Psi.shape == (b, 2 * L - 1, L)
    assert Psi.dtype == jnp.complex64

    Psi_ref = jax.block_until_ready(ftsht_reference(psi, params))
    np.testing.assert_allclose(
        np.asarray(Psi), np.asarray(Psi_ref), rtol=2e-3, atol=2e-4
    )

    print("KERNEL_OK")
</pallas_src>

<mosaic_0001>
module attributes {stable_mosaic.version = 11 : i64} {
  func.func @fused_fdlt_kernel(%arg0: i32, %arg1: i32, %arg2: memref<8x256xf32, #tpu.memory_space<vmem>>, %arg3: memref<256x128xf32, #tpu.memory_space<vmem>>, %arg4: memref<8x128xf32, #tpu.memory_space<vmem>>, %arg5: memref<8x128xf32, #tpu.memory_space<vmem>>) attributes {dimension_semantics = [#tpu.dimension_semantics<parallel>, #tpu.dimension_semantics<arbitrary>], iteration_bounds = array<i64: 1, 1>, scalar_prefetch = 0 : i64, scratch_operands = 1 : i64, tpu.core_type = #tpu.core_type<tc>, window_params = [{transform_indices = @transform_0, window_bounds = array<i64: 8, 256>}, {transform_indices = @transform_1, window_bounds = array<i64: 256, 128>}, {transform_indices = @transform_2, window_bounds = array<i64: 8, 128>}]} {
    %c0_i32 = arith.constant 0 : i32
    %0 = arith.cmpi eq, %arg1, %c0_i32 : i32
    %1 = arith.extui %0 : i1 to i32
    %c0_i32_0 = arith.constant 0 : i32
    %2 = arith.cmpi ne, %1, %c0_i32_0 : i32
    scf.if %2 {
      %cst_10 = arith.constant 0.000000e+00 : f32
      %12 = vector.broadcast %cst_10 : f32 to vector<8x128xf32>
      %c0_11 = arith.constant 0 : index
      %c0_12 = arith.constant 0 : index
      %13 = vector.load %arg5[%c0_11, %c0_12] : memref<8x128xf32, #tpu.memory_space<vmem>>, vector<8x128xf32>
      tpu.vector_store %arg5[%c0_11, %c0_12], %12 {strides = array<i32>} : memref<8x128xf32, #tpu.memory_space<vmem>>, vector<8x128xf32>,
    } else {
    }
    %c0 = arith.constant 0 : index
    %c0_1 = arith.constant 0 : index
    %3 = vector.load %arg5[%c0, %c0_1] : memref<8x128xf32, #tpu.memory_space<vmem>>, vector<8x128xf32>
    %c0_2 = arith.constant 0 : index
    %c0_3 = arith.constant 0 : index
    %4 = vector.load %arg2[%c0_2, %c0_3] : memref<8x256xf32, #tpu.memory_space<vmem>>, vector<8x256xf32>
    %c0_4 = arith.constant 0 : index
    %c0_5 = arith.constant 0 : index
    %5 = vector.load %arg3[%c0_4, %c0_5] : memref<256x128xf32, #tpu.memory_space<vmem>>, vector<256x128xf32>
    %cst = arith.constant dense<0.000000e+00> : vector<8x128xf32>
    %6 = tpu.matmul %4, %5, %cst {dimension_numbers = #tpu.dot_dimension_numbers<[1], [0], [0], [1], [0, 0, 1, 1], [], []>} : vector<8x256xf32>, vector<256x128xf32>, vector<8x128xf32> -> vector<8x128xf32>
    %7 = arith.addf %3, %6 : vector<8x128xf32>
    %c0_6 = arith.constant 0 : index
    %c0_7 = arith.constant 0 : index
    %8 = vector.load %arg5[%c0_6, %c0_7] : memref<8x128xf32, #tpu.memory_space<vmem>>, vector<8x128xf32>
    tpu.vector_store %arg5[%c0_6, %c0_7], %7 {strides = array<i32>} : memref<8x128xf32, #tpu.memory_space<vmem>>, vector<8x128xf32>,
    %c0_i32_8 = arith.constant 0 : i32
    %9 = arith.cmpi eq, %arg1, %c0_i32_8 : i32
    %10 = arith.extui %9 : i1 to i32
    %c0_i32_9 = arith.constant 0 : i32
    %11 = arith.cmpi ne, %10, %c0_i32_9 : i32
    scf.if %11 {
      %c0_10 = arith.constant 0 : index
      %c0_11 = arith.constant 0 : index
      %12 = vector.load %arg5[%c0_10, %c0_11] : memref<8x128xf32, #tpu.memory_space<vmem>>, vector<8x128xf32>
      %c0_12 = arith.constant 0 : index
      %c0_13 = arith.constant 0 : index
      %13 = vector.load %arg4[%c0_12, %c0_13] : memref<8x128xf32, #tpu.memory_space<vmem>>, vector<8x128xf32>
      tpu.vector_store %arg4[%c0_12, %c0_13], %12 {strides = array<i32>} : memref<8x128xf32, #tpu.memory_space<vmem>>, vector<8x128xf32>,
    } else {
    }
    return
  }
  func.func @transform_0(%arg0: i32, %arg1: i32) -> (i32, i32) {
    %c0_i32 = arith.constant 0 : i32
    %c0_i32_0 = arith.constant 0 : i32
    return %c0_i32, %arg1 : i32, i32
  }
  func.func @transform_1(%arg0: i32, %arg1: i32) -> (i32, i32) {
    %c0_i32 = arith.constant 0 : i32
    return %arg1, %arg0 : i32, i32
  }
  func.func @transform_2(%arg0: i32, %arg1: i32) -> (i32, i32) {
    %c0_i32 = arith.constant 0 : i32
    %c0_i32_0 = arith.constant 0 : i32
    return %c0_i32, %arg0 : i32, i32
  }
}

</mosaic_0001>

<llo_original>
// kernel: tpu_custom_call.1
$region0: #{tpu_custom_call.1}
  #allocation0 [shape = 'u32[]', space=smem, size = 0x4, offset = 0x4, fixed_abs, tag = 'smem constant byte address 0x4 - core index']
  #allocation1 [shape = 'u32[144,128]{1,0:T(1,128)}', space=vmem, size = 0x12000, scoped, tag = 'internal scratch']
  #allocation2 [shape = 'f32[8,128]{1,0:T(8,128)}', space=vmem, size = 0x1000, scoped, tag = 'scratch operand']
  %s0 = inlined_call_operand.hbm [shape: f32[8,256], index: 0, kind: input, shape index: {}]
  %s1 = inlined_call_operand.hbm [shape: f32[256,128], index: 1, kind: input, shape index: {}]
  %s2 = inlined_call_operand.hbm [shape: f32[8,128], index: 2, kind: output, shape index: {}]
  %s3 = sld [smem:[#allocation0]]
  $region34: #{tpu_custom_call.1} parent=0
    _
  %s5 = ssub.s32 1, %s3
  %s6 = scalar_select 0, %s5, %s3
  $region1: #{tpu_custom_call.1} parent=0
    #allocation3 [shape = 'u8[8192]{0}', space=vmem, size = 0x2000, scoped, tag = 'input window, operand 0, single buffered']
    #allocation4 [shape = 's32[1]{0}', space=sflag, size = 0x4, scoped, tag = 'scoped memory for tpu_custom_call.1']
    #allocation5 [shape = 's32[1]{0}', space=sflag, size = 0x4, scoped, tag = 'scoped memory for tpu_custom_call.1']
    #allocation6 [shape = 'u8[131072]{0}', space=vmem, size = 0x20000, scoped, tag = 'input window, operand 1, single buffered']
    #allocation7 [shape = 's32[1]{0}', space=sflag, size = 0x4, scoped, tag = 'scoped memory for tpu_custom_call.1']
    #allocation8 [shape = 'u8[4096]{0}', space=vmem, size = 0x1000, scoped, tag = 'output window, operand 0, single buffered']
    %7 = vsyncpa [#allocation4], 0
    %8 = vsyncpa [#allocation7], 0
    %9 = vsyncpa [#allocation5], 0
    // Predicated region
    $region2: #{tpu_custom_call.1} parent=1 // pred_check
      _
    $region3: #{tpu_custom_call.1} parent=1 // pred_check_branch
      %11 = sbr.rel (0) target = $region5
    $region4: #{tpu_custom_call.1} parent=1 // pred_region
      %s13 = ssub.s32 256, 256
      %14 = vsyncadd [#allocation4], %s13
      %s16 = sshll.u32 [#allocation3], 4
      %s17 = int_to_ptr.vmem [resolvable:$true] %s16
      %19 = dma.hbm_to_vmem [thread:$0]  %s0, 256, %s17, [#allocation4]
    $region5: #{tpu_custom_call.1} parent=1 // pred_fallthru
      _
    // Predicated region
    $region6: #{tpu_custom_call.1} parent=1 // pred_check
      _
    $region7: #{tpu_custom_call.1} parent=1 // pred_check_branch
      %21 = sbr.rel (0) target = $region9
    $region8: #{tpu_custom_call.1} parent=1 // pred_region
      %s23 = ssub.s32 4096, 4096
      %24 = vsyncadd [#allocation7], %s23
      %s25 = sshll.u32 [#allocation6], 4
      %s26 = int_to_ptr.vmem [resolvable:$true] %s25
      %31 = dma.hbm_to_vmem [thread:$0]  %s1, 4096, %s26, [#allocation7], 128, 128, 8
    $region9: #{tpu_custom_call.1} parent=1 // pred_fallthru
      _
    // Predicated region
    $region10: #{tpu_custom_call.1} parent=1 // pred_check
      _
    $region11: #{tpu_custom_call.1} parent=1 // pred_check_branch
      %33 = sbr.rel (0) target = $region13
    $region12: #{tpu_custom_call.1} parent=1 // pred_region
      %34 = dma.done [#allocation4], 256
    $region13: #{tpu_custom_call.1} parent=1 // pred_fallthru
      _
    // Predicated region
    $region14: #{tpu_custom_call.1} parent=1 // pred_check
      _
    $region15: #{tpu_custom_call.1} parent=1 // pred_check_branch
      %36 = sbr.rel (0) target = $region17
    $region16: #{tpu_custom_call.1} parent=1 // pred_region
      %37 = dma.done [#allocation7], 4096
    $region17: #{tpu_custom_call.1} parent=1 // pred_fallthru
      _
    %p38 = scmp.eq.s32.totalorder 0, 0
    // Predicated region
    $region18: #{tpu_custom_call.1} parent=1 // pred_check
      %p39 = pneg %p38
    $region19: #{tpu_custom_call.1} parent=1 // pred_check_branch
      %41 = sbr.rel (%p39) target = $region21
    $region20: #{tpu_custom_call.1} parent=1 // pred_region
      %42 = vst [vmem:[#allocation2] sm:$0xff] 0.0
    $region21: #{tpu_custom_call.1} parent=1 // pred_fallthru
      _
    %v43 = vld [vmem:[#allocation2] sm:$0xff]
    %v44 = vld [vmem:[#allocation3] sm:$0xff]
    %v45 = vld [vmem:[#allocation3 + $0x8] sm:$0xff]
    %v46 = vld [vmem:[#allocation6] sm:$0xff]
    %v47 = vld [vmem:[#allocation6 + $0x8] sm:$0xff]
    %v48 = vld [vmem:[#allocation6 + $0x10] sm:$0xff]
    %v49 = vld [vmem:[#allocation6 + $0x18] sm:$0xff]
    %v50 = vld [vmem:[#allocation6 + $0x20] sm:$0xff]
    %v51 = vld [vmem:[#allocation6 + $0x28] sm:$0xff]
    %v52 = vld [vmem:[#allocation6 + $0x30] sm:$0xff]
    %v53 = vld [vmem:[#allocation6 + $0x38] sm:$0xff]
    %v54 = vld [vmem:[#allocation6 + $0x40] sm:$0xff]
    %v55 = vld [vmem:[#allocation6 + $0x48] sm:$0xff]
    %v56 = vld [vmem:[#allocation6 + $0x50] sm:$0xff]
    %v57 = vld [vmem:[#allocation6 + $0x58] sm:$0xff]
    %v58 = vld [vmem:[#allocation6 + $0x60] sm:$0xff]
    %v59 = vld [vmem:[#allocation6 + $0x68] sm:$0xff]
    %v60 = vld [vmem:[#allocation6 + $0x70] sm:$0xff]
    %v61 = vld [vmem:[#allocation6 + $0x78] sm:$0xff]
    %v62 = vld [vmem:[#allocation6 + $0x80] sm:$0xff]
    %v63 = vld [vmem:[#allocation6 + $0x88] sm:$0xff]
    %v64 = vld [vmem:[#allocation6 + $0x90] sm:$0xff]
    %v65 = vld [vmem:[#allocation6 + $0x98] sm:$0xff]
    %v66 = vld [vmem:[#allocation6 + $0xa0] sm:$0xff]
    %v67 = vld [vmem:[#allocation6 + $0xa8] sm:$0xff]
    %v68 = vld [vmem:[#allocation6 + $0xb0] sm:$0xff]
    %v69 = vld [vmem:[#allocation6 + $0xb8] sm:$0xff]
    %v70 = vld [vmem:[#allocation6 + $0xc0] sm:$0xff]
    %v71 = vld [vmem:[#allocation6 + $0xc8] sm:$0xff]
    %v72 = vld [vmem:[#allocation6 + $0xd0] sm:$0xff]
    %v73 = vld [vmem:[#allocation6 + $0xd8] sm:$0xff]
    %v74 = vld [vmem:[#allocation6 + $0xe0] sm:$0xff]
    %v75 = vld [vmem:[#allocation6 + $0xe8] sm:$0xff]
    %v76 = vld [vmem:[#allocation6 + $0xf0] sm:$0xff]
    %v77 = vld [vmem:[#allocation6 + $0xf8] sm:$0xff]
    %78 = vmatprep.subr.mxu0 0.0
    %79 = vmatpush1.msra.mxu0 %v46
    %80 = vmatprep.subr.mxu0 0.0
    %81 = vmatpush1.msra.mxu0 %v47
    %82 = vmatprep.subr.mxu0 0.0
    %83 = vmatpush1.msra.mxu0 %v48
    %84 = vmatprep.subr.mxu0 0.0
    %85 = vmatpush1.msra.mxu0 %v49
    %86 = vmatprep.subr.mxu0 0.0
    %87 = vmatpush1.msra.mxu0 %v50
    %88 = vmatprep.subr.mxu0 0.0
    %89 = vmatpush1.msra.mxu0 %v51
    %90 = vmatprep.subr.mxu0 0.0
    %91 = vmatpush1.msra.mxu0 %v52
    %92 = vmatprep.subr.mxu0 0.0
    %93 = vmatpush1.msra.mxu0 %v53
    %94 = vmatprep.subr.mxu0 0.0
    %95 = vmatpush1.msra.mxu0 %v54
    %96 = vmatprep.subr.mxu0 0.0
    %97 = vmatpush1.msra.mxu0 %v55
    %98 = vmatprep.subr.mxu0 0.0
    %99 = vmatpush1.msra.mxu0 %v56
    %100 = vmatprep.subr.mxu0 0.0
    %101 = vmatpush1.msra.mxu0 %v57
    %102 = vmatprep.subr.mxu0 0.0
    %103 = vmatpush1.msra.mxu0 %v58
    %104 = vmatprep.subr.mxu0 0.0
    %105 = vmatpush1.msra.mxu0 %v59
    %106 = vmatprep.subr.mxu0 0.0
    %107 = vmatpush1.msra.mxu0 %v60
    %108 = vmatprep.subr.mxu0 0.0
    %109 = vmatpush1.msra.mxu0 %v61
    %110 = vmatprep.subr.mxu0 0.0
    %111 = vmatpush1.msra.mxu0 %v62
    %112 = vmatprep.subr.mxu0 0.0
    %113 = vmatpush1.msra.mxu0 %v63
    %114 = vmatprep.subr.mxu0 0.0
    %115 = vmatpush1.msra.mxu0 %v64
    %116 = vmatprep.subr.mxu0 0.0
    %117 = vmatpush1.msra.mxu0 %v65
    %118 = vmatprep.subr.mxu0 0.0
    %119 = vmatpush1.msra.mxu0 %v66
    %120 = vmatprep.subr.mxu0 0.0
    %121 = vmatpush1.msra.mxu0 %v67
    %122 = vmatprep.subr.mxu0 0.0
    %123 = vmatpush1.msra.mxu0 %v68
    %124 = vmatprep.subr.mxu0 0.0
    %125 = vmatpush1.msra.mxu0 %v69
    %126 = vmatprep.subr.mxu0 0.0
    %127 = vmatpush1.msra.mxu0 %v70
    %128 = vmatprep.subr.mxu0 0.0
    %129 = vmatpush1.msra.mxu0 %v71
    %130 = vmatprep.subr.mxu0 0.0
    %131 = vmatpush1.msra.mxu0 %v72
    %132 = vmatprep.subr.mxu0 0.0
    %133 = vmatpush1.msra.mxu0 %v73
    %134 = vmatprep.subr.mxu0 0.0
    %135 = vmatpush1.msra.mxu0 %v74
    %136 = vmatprep.subr.mxu0 0.0
    %137 = vmatpush1.msra.mxu0 %v75
    %138 = vmatprep.subr.mxu0 0.0
    %139 = vmatpush1.msra.mxu0 %v76
    %140 = vmatprep.subr.mxu0 0.0
    %141 = vmatpush1.msra.mxu0 %v77
    %142 = vmatprep.mubr.f32.mxu0 %v45
    %143 = vmatmul.mubr.f32.gmra.mrb[0].mxu0 %v44
    %v144 = vpop.f32.mrb[0].mxu0
    %v145 = vadd.f32 0.0, %v144
    %v146 = vpop.f32.mrb[0].mxu0
    %147 = vdwg.mxu0
    %v148 = vadd.f32 %v43, %v145
    %149 = vst [vmem:[#allocation2] sm:$0xff] %v148
    // Predicated region
    $region22: #{tpu_custom_call.1} parent=1 // pred_check
      %p150 = pneg %p38
    $region23: #{tpu_custom_call.1} parent=1 // pred_check_branch
      %152 = sbr.rel (%p150) target = $region25
    $region24: #{tpu_custom_call.1} parent=1 // pred_region
      %v153 = vld [vmem:[#allocation2] sm:$0xff]
      %154 = vst [vmem:[#allocation8] sm:$0xff] %v153
    $region25: #{tpu_custom_call.1} parent=1 // pred_fallthru
      _
    // Predicated region
    $region26: #{tpu_custom_call.1} parent=1 // pred_check
      _
    $region27: #{tpu_custom_call.1} parent=1 // pred_check_branch
      %156 = sbr.rel (0) target = $region29
    $region28: #{tpu_custom_call.1} parent=1 // pred_region
      %s158 = ssub.s32 128, 128
      %159 = vsyncadd [#allocation5], %s158
      %s161 = sshll.u32 [#allocation8], 4
      %s162 = int_to_ptr.vmem [resolvable:$true] %s161
      %164 = dma.vmem_to_hbm [thread:$0]  %s162, 128, %s2, [#allocation5]
    $region29: #{tpu_custom_call.1} parent=1 // pred_fallthru
      _
    // Predicated region
    $region30: #{tpu_custom_call.1} parent=1 // pred_check
      _
    $region31: #{tpu_custom_call.1} parent=1 // pred_check_branch
      %166 = sbr.rel (0) target = $region33
    $region32: #{tpu_custom_call.1} parent=1 // pred_region
      %167 = dma.done [#allocation5], 128
    $region33: #{tpu_custom_call.1} parent=1 // pred_fallthru
      _
    %168 = vsyncpa [#allocation4], 1
    %169 = vsyncpa [#allocation7], 1
    %170 = vsyncpa [#allocation5], 1

</llo_original>
